<compile_context>
chip_gen: v7x
topology: tpu7x:2x2x1
jax: 0.10.0
libtpu: 0.0.40
codegen_flags: <defaults>
</compile_context>

<pallas_src>
import functools

import jax
import jax.numpy as jnp
from jax.experimental import pallas as pl
from jax.experimental.pallas import tpu as pltpu


def _round_up(x, m):
    return ((x + m - 1) // m) * m


def _supports_bf16_vpu():
    """bf16 elementwise path only on chips with a bf16 VPU (v6e / v7x +)."""
    try:
        kind = jax.devices()[0].device_kind.lower()
    except Exception:
        return True
    for tag in ("v2", "v3", "v4", "v5"):
        if tag in kind:
            return False
    return True


def actor_mlp_kernel(x_ref, w1_ref, b1_ref, w2_ref, b2_ref, w3_ref, b3_ref,
                     mean_ref):
    """One batch tile of the 3-layer policy MLP (Linear-ReLU-Linear-ReLU-Linear).

    Weights arrive in bf16 (MXU-native); matmul accumulation is f32. The
    elementwise bias-add/ReLU dtype follows the bias dtype chosen by the
    wrapper (bf16 on v6e/v7x, f32 on v5e and earlier).
    """
    eltwise_dtype = b1_ref.dtype

    x = x_ref[...].astype(jnp.bfloat16)

    # fc1 + ReLU
    h1 = jnp.dot(x, w1_ref[...], preferred_element_type=jnp.float32)
    h1 = jnp.maximum(h1.astype(eltwise_dtype) + b1_ref[...], 0.0)

    # fc2 + ReLU
    h2 = jnp.dot(h1.astype(jnp.bfloat16), w2_ref[...],
                 preferred_element_type=jnp.float32)
    h2 = jnp.maximum(h2.astype(eltwise_dtype) + b2_ref[...], 0.0)

    # fc3 -> mean of the Normal distribution (full action dim, no lane padding)
    mean = jnp.dot(h2.astype(jnp.bfloat16), w3_ref[...],
                   preferred_element_type=jnp.float32)
    mean_ref[...] = (mean + b3_ref[...].astype(jnp.float32)).astype(mean_ref.dtype)


def prepare_actor_params(params, *, eltwise_dtype=None):
    """One-time conversion of raw f32 params into the kernel's layout/dtypes.

    Call once (outside the training/inference hot loop) so the per-call path
    contains nothing but the Pallas kernel itself.
    """
    if eltwise_dtype is None:
        eltwise_dtype = jnp.bfloat16 if _supports_bf16_vpu() else jnp.float32
    return {
        "w1": params["w1"].astype(jnp.bfloat16),
        "w2": params["w2"].astype(jnp.bfloat16),
        "w3": params["w3"].astype(jnp.bfloat16),
        "b1": params["b1"].astype(eltwise_dtype).reshape(1, -1),
        "b2": params["b2"].astype(eltwise_dtype).reshape(1, -1),
        "b3": params["b3"].astype(jnp.float32).reshape(1, -1),
        "std": jnp.exp(params["log_std"].astype(jnp.float32)),
    }


@functools.partial(jax.jit, static_argnames=("max_tile_b",))
def actor_forward(state, prepared, *, max_tile_b=1024):
    """Returns (mean, std) of the policy Normal distribution.

    `prepared` must come from `prepare_actor_params`.
    """
    w1, w2, w3 = prepared["w1"], prepared["w2"], prepared["w3"]
    b1, b2, b3 = prepared["b1"], prepared["b2"], prepared["b3"]
    std_vec = prepared["std"]

    B, D = state.shape
    F1 = w1.shape[1]
    F2 = w2.shape[1]
    A = w3.shape[1]

    x = state.astype(jnp.float32)

    # Batch tiling:
    #  * small B: single grid step, tile_b == B exactly (no pad, no slice);
    #  * large B: tiles are multiples of 256 rows (MXU-friendly) and there are
    #    always >= 2 tiles on the "parallel" axis so v7x's two TensorCores both
    #    get work. VMEM stays tiny (<~3 MiB at 1024-row tiles).
    if B <= 512:
        tile_b = B
        B_pad = B
    else:
        tile_b = min(max_tile_b, _round_up(pl.cdiv(B, 2), 256))
        B_pad = _round_up(B, tile_b)
        if B_pad != B:
            x = jnp.pad(x, ((0, B_pad - B), (0, 0)))
    num_tiles = B_pad // tile_b

    full2d = lambda shape: pl.BlockSpec(shape, lambda i: (0, 0))

    mean_full = pl.pallas_call(
        actor_mlp_kernel,
        out_shape=jax.ShapeDtypeStruct((B_pad, A), jnp.float32),
        grid_spec=pl.GridSpec(
            grid=(num_tiles,),
            in_specs=[
                pl.BlockSpec((tile_b, D), lambda i: (i, 0)),   # state tile
                full2d((D, F1)),                               # w1 (bf16)
                full2d((1, F1)),                               # b1
                full2d((F1, F2)),                              # w2 (bf16)
                full2d((1, F2)),                               # b2
                full2d((F2, A)),                               # w3 (bf16)
                full2d((1, A)),                                # b3
            ],
            out_specs=pl.BlockSpec((tile_b, A), lambda i: (i, 0)),
        ),
        compiler_params=pltpu.CompilerParams(
            dimension_semantics=(
                ("parallel",) if num_tiles > 1 else ("arbitrary",)),
            vmem_limit_bytes=32 * 1024 * 1024,
        ),
    )(x, w1, b1, w2, b2, w3, b3)

    mean = mean_full if B_pad == B else mean_full[:B]
    # std = exp(log_std).expand_as(mean) is data-independent -> wrapper-side.
    std = jnp.broadcast_to(std_vec, (B, A))
    return mean, std


def init_params(key, input_dims, n_actions, fc1_dims=256, fc2_dims=256):
    """Deterministic synthetic init (PyTorch-Linear-style uniform bounds)."""
    ks = jax.random.split(key, 6)

    def linear(kw, kb, fan_in, fan_out):
        bound = 1.0 / jnp.sqrt(fan_in)
        w = jax.random.uniform(kw, (fan_in, fan_out), jnp.float32, -bound, bound)
        b = jax.random.uniform(kb, (fan_out,), jnp.float32, -bound, bound)
        return w, b

    w1, b1 = linear(ks[0], ks[1], input_dims, fc1_dims)
    w2, b2 = linear(ks[2], ks[3], fc1_dims, fc2_dims)
    w3, b3 = linear(ks[4], ks[5], fc2_dims, n_actions)
    log_std = jnp.zeros((n_actions,), jnp.float32)  # nn.Parameter(torch.zeros(n_actions))
    return {"w1": w1, "b1": b1, "w2": w2, "b2": b2,
            "w3": w3, "b3": b3, "log_std": log_std}


def _reference_mean(state, prepared, params):
    """Pure-JAX reference along the same bf16-weight / kernel-eltwise path."""
    eltw = prepared["b1"].dtype
    h1 = jnp.dot(state.astype(jnp.bfloat16), prepared["w1"],
                 preferred_element_type=jnp.float32)
    h1 = jnp.maximum(h1.astype(eltw) + prepared["b1"][0], 0.0)
    h2 = jnp.dot(h1.astype(jnp.bfloat16), prepared["w2"],
                 preferred_element_type=jnp.float32)
    h2 = jnp.maximum(h2.astype(eltw) + prepared["b2"][0], 0.0)
    mean = jnp.dot(h2.astype(jnp.bfloat16), prepared["w3"],
                   preferred_element_type=jnp.float32) + prepared["b3"][0]
    # Pure-f32 (PyTorch-equivalent) path, for a loose sanity check.
    h1f = jnp.maximum(state @ params["w1"] + params["b1"], 0.0)
    h2f = jnp.maximum(h1f @ params["w2"] + params["b2"], 0.0)
    mean_f32 = h2f @ params["w3"] + params["b3"]
    return mean, mean_f32


if __name__ == "__main__":
    key = jax.random.PRNGKey(0)
    k_state, k_state_big, k_params = jax.random.split(key, 3)

    input_dims = 8      # small continuous observation space
    n_actions = 4
    fc1_dims = fc2_dims = 256

    params = init_params(k_params, input_dims, n_actions, fc1_dims, fc2_dims)
    prepared = prepare_actor_params(params)
    std_expected = jnp.exp(params["log_std"])

    # ---- small-batch / single-tile path -------------------------------------
    batch = 16
    state = jax.random.normal(k_state, (batch, input_dims), jnp.float32)
    mean, std = actor_forward(state, prepared)
    jax.block_until_ready((mean, std))

    mean_ref, mean_f32 = _reference_mean(state, prepared, params)
    assert mean.shape == (batch, n_actions) and std.shape == (batch, n_actions)
    assert jnp.allclose(mean, mean_ref, atol=1e-2, rtol=1e-2)
    assert jnp.allclose(mean, mean_f32, atol=5e-2, rtol=5e-2)
    assert jnp.allclose(std, jnp.broadcast_to(std_expected, mean.shape),
                        atol=1e-6, rtol=1e-6)

    # ---- large-batch / multi-tile (padded) path ------------------------------
    batch_big = 700   # exercises tile_b=512, B_pad=1024, 2 parallel tiles
    state_big = jax.random.normal(k_state_big, (batch_big, input_dims),
                                  jnp.float32)
    mean_b, std_b = actor_forward(state_big, prepared)
    jax.block_until_ready((mean_b, std_b))

    mean_b_ref, mean_b_f32 = _reference_mean(state_big, prepared, params)
    assert mean_b.shape == (batch_big, n_actions)
    assert std_b.shape == (batch_big, n_actions)
    assert jnp.allclose(mean_b, mean_b_ref, atol=1e-2, rtol=1e-2)
    assert jnp.allclose(mean_b, mean_b_f32, atol=5e-2, rtol=5e-2)
    assert jnp.allclose(std_b, jnp.broadcast_to(std_expected, mean_b.shape),
                        atol=1e-6, rtol=1e-6)

    # TODO(synk): Normal(mean, std) distribution object / sampling, the Adam
    # optimizer and checkpoint I/O are host-side glue (not tensor ops); the
    # kernel returns the distribution's (mean, std) parameters.
    print("KERNEL_OK")
</pallas_src>

<mosaic_0001>
module attributes {stable_mosaic.version = 11 : i64} {
  func.func @actor_mlp_kernel(%arg0: i32, %arg1: memref<16x8xf32, #tpu.memory_space<vmem>>, %arg2: memref<8x256xbf16, #tpu.memory_space<vmem>>, %arg3: memref<1x256xbf16, #tpu.memory_space<vmem>>, %arg4: memref<256x256xbf16, #tpu.memory_space<vmem>>, %arg5: memref<1x256xbf16, #tpu.memory_space<vmem>>, %arg6: memref<256x4xbf16, #tpu.memory_space<vmem>>, %arg7: memref<1x4xf32, #tpu.memory_space<vmem>>, %arg8: memref<16x4xf32, #tpu.memory_space<vmem>>) attributes {dimension_semantics = [#tpu.dimension_semantics<arbitrary>], iteration_bounds = array<i64: 1>, scalar_prefetch = 0 : i64, scratch_operands = 0 : i64, tpu.core_type = #tpu.core_type<tc>, window_params = [{transform_indices = @transform_0, window_bounds = array<i64: 16, 8>}, {pipeline_mode = #tpu.pipeline_mode<synchronous>, transform_indices = @transform_1, window_bounds = array<i64: 8, 256>}, {pipeline_mode = #tpu.pipeline_mode<synchronous>, transform_indices = @transform_2, window_bounds = array<i64: 1, 256>}, {pipeline_mode = #tpu.pipeline_mode<synchronous>, transform_indices = @transform_3, window_bounds = array<i64: 256, 256>}, {pipeline_mode = #tpu.pipeline_mode<synchronous>, transform_indices = @transform_4, window_bounds = array<i64: 1, 256>}, {pipeline_mode = #tpu.pipeline_mode<synchronous>, transform_indices = @transform_5, window_bounds = array<i64: 256, 4>}, {pipeline_mode = #tpu.pipeline_mode<synchronous>, transform_indices = @transform_6, window_bounds = array<i64: 1, 4>}, {transform_indices = @transform_7, window_bounds = array<i64: 16, 4>}]} {
    %c0 = arith.constant 0 : index
    %c0_0 = arith.constant 0 : index
    %0 = vector.load %arg1[%c0, %c0_0] : memref<16x8xf32, #tpu.memory_space<vmem>>, vector<16x8xf32>
    %1 = arith.truncf %0 : vector<16x8xf32> to vector<16x8xbf16>
    %c0_1 = arith.constant 0 : index
    %c0_2 = arith.constant 0 : index
    %2 = vector.load %arg2[%c0_1, %c0_2] : memref<8x256xbf16, #tpu.memory_space<vmem>>, vector<8x256xbf16>
    %cst = arith.constant dense<0.000000e+00> : vector<16x256xf32>
    %3 = tpu.matmul %1, %2, %cst {dimension_numbers = #tpu.dot_dimension_numbers<[1], [0], [0], [1], [0, 0, 1, 1], [], []>} : vector<16x8xbf16>, vector<8x256xbf16>, vector<16x256xf32> -> vector<16x256xf32>
    %4 = arith.truncf %3 : vector<16x256xf32> to vector<16x256xbf16>
    %c0_3 = arith.constant 0 : index
    %c0_4 = arith.constant 0 : index
    %5 = vector.load %arg3[%c0_3, %c0_4] : memref<1x256xbf16, #tpu.memory_space<vmem>>, vector<1x256xbf16>
    %6 = vector.broadcast %5 : vector<1x256xbf16> to vector<16x256xbf16>
    %7 = arith.addf %4, %6 : vector<16x256xbf16>
    %cst_5 = arith.constant 0.000000e+00 : bf16
    %8 = vector.broadcast %cst_5 : bf16 to vector<16x256xbf16>
    %9 = arith.maximumf %7, %8 : vector<16x256xbf16>
    %c0_6 = arith.constant 0 : index
    %c0_7 = arith.constant 0 : index
    %10 = vector.load %arg4[%c0_6, %c0_7] : memref<256x256xbf16, #tpu.memory_space<vmem>>, vector<256x256xbf16>
    %cst_8 = arith.constant dense<0.000000e+00> : vector<16x256xf32>
    %11 = tpu.matmul %9, %10, %cst_8 {dimension_numbers = #tpu.dot_dimension_numbers<[1], [0], [0], [1], [0, 0, 1, 1], [], []>} : vector<16x256xbf16>, vector<256x256xbf16>, vector<16x256xf32> -> vector<16x256xf32>
    %12 = arith.truncf %11 : vector<16x256xf32> to vector<16x256xbf16>
    %c0_9 = arith.constant 0 : index
    %c0_10 = arith.constant 0 : index
    %13 = vector.load %arg5[%c0_9, %c0_10] : memref<1x256xbf16, #tpu.memory_space<vmem>>, vector<1x256xbf16>
    %14 = vector.broadcast %13 : vector<1x256xbf16> to vector<16x256xbf16>
    %15 = arith.addf %12, %14 : vector<16x256xbf16>
    %cst_11 = arith.constant 0.000000e+00 : bf16
    %16 = vector.broadcast %cst_11 : bf16 to vector<16x256xbf16>
    %17 = arith.maximumf %15, %16 : vector<16x256xbf16>
    %c0_12 = arith.constant 0 : index
    %c0_13 = arith.constant 0 : index
    %18 = vector.load %arg6[%c0_12, %c0_13] : memref<256x4xbf16, #tpu.memory_space<vmem>>, vector<256x4xbf16>
    %cst_14 = arith.constant dense<0.000000e+00> : vector<16x4xf32>
    %19 = tpu.matmul %17, %18, %cst_14 {dimension_numbers = #tpu.dot_dimension_numbers<[1], [0], [0], [1], [0, 0, 1, 1], [], []>} : vector<16x256xbf16>, vector<256x4xbf16>, vector<16x4xf32> -> vector<16x4xf32>
    %c0_15 = arith.constant 0 : index
    %c0_16 = arith.constant 0 : index
    %20 = vector.load %arg7[%c0_15, %c0_16] : memref<1x4xf32, #tpu.memory_space<vmem>>, vector<1x4xf32>
    %21 = vector.broadcast %20 : vector<1x4xf32> to vector<16x4xf32>
    %22 = arith.addf %19, %21 : vector<16x4xf32>
    %c0_17 = arith.constant 0 : index
    %c0_18 = arith.constant 0 : index
    %23 = vector.load %arg8[%c0_17, %c0_18] : memref<16x4xf32, #tpu.memory_space<vmem>>, vector<16x4xf32>
    tpu.vector_store %arg8[%c0_17, %c0_18], %22 {strides = array<i32>} : memref<16x4xf32, #tpu.memory_space<vmem>>, vector<16x4xf32>,
    return
  }
  func.func @transform_0(%arg0: i32) -> (i32, i32) {
    %c0_i32 = arith.constant 0 : i32
    %c0_i32_0 = arith.constant 0 : i32
    return %arg0, %c0_i32 : i32, i32
  }
  func.func @transform_1(%arg0: i32) -> (i32, i32) {
    %c0_i32 = arith.constant 0 : i32
    %c0_i32_0 = arith.constant 0 : i32
    %c0_i32_1 = arith.constant 0 : i32
    return %c0_i32, %c0_i32_0 : i32, i32
  }
  func.func @transform_2(%arg0: i32) -> (i32, i32) {
    %c0_i32 = arith.constant 0 : i32
    %c0_i32_0 = arith.constant 0 : i32
    %c0_i32_1 = arith.constant 0 : i32
    return %c0_i32, %c0_i32_0 : i32, i32
  }
  func.func @transform_3(%arg0: i32) -> (i32, i32) {
    %c0_i32 = arith.constant 0 : i32
    %c0_i32_0 = arith.constant 0 : i32
    %c0_i32_1 = arith.constant 0 : i32
    return %c0_i32, %c0_i32_0 : i32, i32
  }
  func.func @transform_4(%arg0: i32) -> (i32, i32) {
    %c0_i32 = arith.constant 0 : i32
    %c0_i32_0 = arith.constant 0 : i32
    %c0_i32_1 = arith.constant 0 : i32
    return %c0_i32, %c0_i32_0 : i32, i32
  }
  func.func @transform_5(%arg0: i32) -> (i32, i32) {
    %c0_i32 = arith.constant 0 : i32
    %c0_i32_0 = arith.constant 0 : i32
    %c0_i32_1 = arith.constant 0 : i32
    return %c0_i32, %c0_i32_0 : i32, i32
  }
  func.func @transform_6(%arg0: i32) -> (i32, i32) {
    %c0_i32 = arith.constant 0 : i32
    %c0_i32_0 = arith.constant 0 : i32
    %c0_i32_1 = arith.constant 0 : i32
    return %c0_i32, %c0_i32_0 : i32, i32
  }
  func.func @transform_7(%arg0: i32) -> (i32, i32) {
    %c0_i32 = arith.constant 0 : i32
    %c0_i32_0 = arith.constant 0 : i32
    return %arg0, %c0_i32 : i32, i32
  }
}

</mosaic_0001>

<llo_original>
// kernel: actor_forward.1
$region0: #{actor_forward.1}
  #allocation0 [shape = 'u32[]', space=smem, size = 0x4, offset = 0x4, fixed_abs, tag = 'smem constant byte address 0x4 - core index']
  #allocation1 [shape = 'u32[144,128]{1,0:T(1,128)}', space=vmem, size = 0x12000, scoped, tag = 'internal scratch']
  %s0 = inlined_call_operand.vmem [shape: f32[16,8], index: 0, kind: input, shape index: {}]
  %s1 = inlined_call_operand.vmem [shape: bf16[8,256], index: 1, kind: input, shape index: {}]
  %s2 = inlined_call_operand.vmem [shape: bf16[1,256], index: 2, kind: input, shape index: {}]
  %s3 = inlined_call_operand.hbm [shape: bf16[256,256], index: 3, kind: input, shape index: {}]
  %s4 = inlined_call_operand.vmem [shape: bf16[1,256], index: 4, kind: input, shape index: {}]
  %s5 = inlined_call_operand.vmem [shape: bf16[256,4], index: 5, kind: input, shape index: {}]
  %s6 = inlined_call_operand.vmem [shape: f32[1,4], index: 6, kind: input, shape index: {}]
  %s7 = inlined_call_operand.vmem [shape: f32[16,4], index: 7, kind: output, shape index: {}]
  %s8 = sld [smem:[#allocation0]]
  $region42: #{actor_forward.1} parent=0
    _
  %s10 = ssub.s32 1, %s8
  %s11 = scalar_select 0, %s10, %s8
  $region1: #{actor_forward.1} parent=0
    #allocation2 [shape = 'u8[131072]{0}', space=vmem, size = 0x20000, scoped, tag = 'input window, operand 3, single buffered']
    #allocation3 [shape = 's32[1]{0}', space=sflag, size = 0x4, scoped, tag = 'scoped memory for actor_forward.1']
    %12 = vsyncpa [#allocation3], 0
    // Predicated region
    $region2: #{actor_forward.1} parent=1 // pred_check
      _
    $region3: #{actor_forward.1} parent=1 // pred_check_branch
      %14 = sbr.rel (0) target = $region5
    $region4: #{actor_forward.1} parent=1 // pred_region
      _
    $region5: #{actor_forward.1} parent=1 // pred_fallthru
      _
    // Predicated region
    $region6: #{actor_forward.1} parent=1 // pred_check
      _
    $region7: #{actor_forward.1} parent=1 // pred_check_branch
      %16 = sbr.rel (0) target = $region9
    $region8: #{actor_forward.1} parent=1 // pred_region
      _
    $region9: #{actor_forward.1} parent=1 // pred_fallthru
      _
    // Predicated region
    $region10: #{actor_forward.1} parent=1 // pred_check
      _
    $region11: #{actor_forward.1} parent=1 // pred_check_branch
      %18 = sbr.rel (0) target = $region13
    $region12: #{actor_forward.1} parent=1 // pred_region
      _
    $region13: #{actor_forward.1} parent=1 // pred_fallthru
      _
    // Predicated region
    $region14: #{actor_forward.1} parent=1 // pred_check
      _
    $region15: #{actor_forward.1} parent=1 // pred_check_branch
      %20 = sbr.rel (0) target = $region17
    $region16: #{actor_forward.1} parent=1 // pred_region
      %s22 = ssub.s32 4096, 4096
      %23 = vsyncadd [#allocation3], %s22
      %s24 = sshll.u32 [#allocation2], 4
      %s25 = int_to_ptr.vmem [resolvable:$true] %s24
      %30 = dma.hbm_to_vmem [thread:$0]  %s3, 4096, %s25, [#allocation3], 128, 128, 8
    $region17: #{actor_forward.1} parent=1 // pred_fallthru
      _
    // Predicated region
    $region18: #{actor_forward.1} parent=1 // pred_check
      _
    $region19: #{actor_forward.1} parent=1 // pred_check_branch
      %32 = sbr.rel (0) target = $region21
    $region20: #{actor_forward.1} parent=1 // pred_region
      _
    $region21: #{actor_forward.1} parent=1 // pred_fallthru
      _
    // Predicated region
    $region22: #{actor_forward.1} parent=1 // pred_check
      _
    $region23: #{actor_forward.1} parent=1 // pred_check_branch
      %34 = sbr.rel (0) target = $region25
    $region24: #{actor_forward.1} parent=1 // pred_region
      _
    $region25: #{actor_forward.1} parent=1 // pred_fallthru
      _
    // Predicated region
    $region26: #{actor_forward.1} parent=1 // pred_check
      _
    $region27: #{actor_forward.1} parent=1 // pred_check_branch
      %36 = sbr.rel (0) target = $region29
    $region28: #{actor_forward.1} parent=1 // pred_region
      _
    $region29: #{actor_forward.1} parent=1 // pred_fallthru
      _
    // Predicated region
    $region30: #{actor_forward.1} parent=1 // pred_check
      _
    $region31: #{actor_forward.1} parent=1 // pred_check_branch
      %38 = sbr.rel (0) target = $region33
    $region32: #{actor_forward.1} parent=1 // pred_region
      %39 = dma.done [#allocation3], 4096
    $region33: #{actor_forward.1} parent=1 // pred_fallthru
      _
    %v41 = vld [vmem:[%s0] sm:$0xff]
    %v42 = vld [vmem:[%s0 + $0x8] sm:$0xff]
    %v43 = vpack.c.bf16 %v42, %v41
    %v44 = vld [vmem:[%s1] sm:$0xff]
    %v46 = vunpack.c.l.b16 %v44
    %v47 = vunpack.c.h.b16 %v44
    %v48 = vpack.c.b16 %v46, %v46
    %v49 = vpack.c.b16 %v47, %v47
    %vm50 = vcmask 64512
    %v52 = vsel %vm50, %v43, 0
    %vm54 = vcmask 1043456
    %v56 = vsel %vm54, %v48, 0
    %v59 = vsel %vm54, %v49, 0
    %61 = vmatprep.subr.bf16.mxu0 %v59
    %62 = vmatpush1.bf16.msra.mxu0 %v56
    %63 = vmatprep.subr.bf16.mxu0 0
    %64 = vmatpush1.bf16.msra.mxu0 0
    %65 = vmatprep.subr.bf16.mxu0 0
    %66 = vmatpush1.bf16.msra.mxu0 0
    %67 = vmatprep.subr.bf16.mxu0 0
    %68 = vmatpush1.bf16.msra.mxu0 0
    %69 = vmatprep.subr.bf16.mxu0 0
    %70 = vmatpush1.bf16.msra.mxu0 0
    %71 = vmatprep.subr.bf16.mxu0 0
    %72 = vmatpush1.bf16.msra.mxu0 0
    %73 = vmatprep.subr.bf16.mxu0 0
    %74 = vmatpush1.bf16.msra.mxu0 0
    %75 = vmatprep.subr.bf16.mxu0 0
    %76 = vmatpush1.bf16.msra.mxu0 0
    %77 = vmatprep.subr.bf16.mxu0 0
    %78 = vmatpush1.bf16.msra.mxu0 0
    %79 = vmatprep.subr.bf16.mxu0 0
    %80 = vmatpush1.bf16.msra.mxu0 0
    %81 = vmatprep.subr.bf16.mxu0 0
    %82 = vmatpush1.bf16.msra.mxu0 0
    %83 = vmatprep.subr.bf16.mxu0 0
    %84 = vmatpush1.bf16.msra.mxu0 0
    %85 = vmatprep.subr.bf16.mxu0 0
    %86 = vmatpush1.bf16.msra.mxu0 0
    %87 = vmatprep.subr.bf16.mxu0 0
    %88 = vmatpush1.bf16.msra.mxu0 0
    %89 = vmatprep.subr.bf16.mxu0 0
    %90 = vmatpush1.bf16.msra.mxu0 0
    %91 = vmatprep.subr.bf16.mxu0 0
    %92 = vmatpush1.bf16.msra.mxu0 0
    %93 = vmatprep.mubr.bf16.mxu0 0
    %94 = vmatmul.mubr.bf16.gmra.mrb[0].mxu0 %v52
    %v95 = vpop.f32.mrb[0].mxu0
    %v96 = vadd.f32 0.0, %v95
    %v97 = vpop.f32.mrb[0].mxu0
    %v98 = vadd.f32 0.0, %v97
    %v99 = vpop.f32.mrb[0].mxu0
    %v100 = vadd.f32 0.0, %v99
    %v101 = vpop.f32.mrb[0].mxu0
    %v102 = vadd.f32 0.0, %v101
    %103 = vdwg.mxu0
    %v104 = vpack.c.bf16 %v100, %v96
    %v105 = vpack.c.bf16 %v102, %v98
    %v106 = vld [vmem:[%s2] sm:$0x3]
    %v109 = vunpack.c.l.s4 1966171168
    %v110 = vunpack.c.0.s8 %v109
    %v111 = vlaneseq
    %v112 = vshrl.u32 %v111, 7
    %v113 = vsub.s32 %v110, %v112
    %v114 = vrot.slane %v106, %v113
    %v115 = vcombine.high %v114, %v114
    %v117 = vunpack.c.l.s4 1966171168
    %v118 = vunpack.c.0.s8 %v117
    %v119 = vlaneseq
    %v120 = vshrl.u32 %v119, 7
    %v121 = vsub.s32 %v118, %v120
    %v122 = vrot.slane %v114, %v121
    %v124 = vunpack.c.l.s4 1966171168
    %v125 = vunpack.c.0.s8 %v124
    %v126 = vlaneseq
    %v127 = vshrl.u32 %v126, 7
    %v128 = vsub.s32 %v125, %v127
    %v129 = vrot.slane %v115, %v128
    %v131 = vpack.i.b16 %v122, %v122
    %v133 = vlaneseq
    %v134 = vshrl.u32 %v133, 7
    %v135 = vsub.s32 0, %v134
    %v136 = vrot.slane %v131, %v135
    %v138 = vpack.i.b16 %v129, %v129
    %v140 = vlaneseq
    %v141 = vshrl.u32 %v140, 7
    %v142 = vsub.s32 0, %v141
    %v143 = vrot.slane %v138, %v142
    %v144 = vadd.bf16 %v104, %v136
    %v145 = vadd.bf16 %v105, %v143
    %v146 = vmax.bf16 %v144, 0
    %v147 = vmax.bf16 %v145, 0
    %v148 = vld [vmem:[#allocation2] sm:$0xff]
    %v149 = vld [vmem:[#allocation2 + $0x8] sm:$0xff]
    %v150 = vld [vmem:[#allocation2 + $0x10] sm:$0xff]
    %v151 = vld [vmem:[#allocation2 + $0x18] sm:$0xff]
    %v152 = vld [vmem:[#allocation2 + $0x20] sm:$0xff]
    %v153 = vld [vmem:[#allocation2 + $0x28] sm:$0xff]
    %v154 = vld [vmem:[#allocation2 + $0x30] sm:$0xff]
    %v155 = vld [vmem:[#allocation2 + $0x38] sm:$0xff]
    %v156 = vld [vmem:[#allocation2 + $0x40] sm:$0xff]
    %v157 = vld [vmem:[#allocation2 + $0x48] sm:$0xff]
    %v158 = vld [vmem:[#allocation2 + $0x50] sm:$0xff]
    %v159 = vld [vmem:[#allocation2 + $0x58] sm:$0xff]
    %v160 = vld [vmem:[#allocation2 + $0x60] sm:$0xff]
    %v161 = vld [vmem:[#allocation2 + $0x68] sm:$0xff]
    %v162 = vld [vmem:[#allocation2 + $0x70] sm:$0xff]
    %v163 = vld [vmem:[#allocation2 + $0x78] sm:$0xff]
    %v164 = vld [vmem:[#allocation2 + $0x80] sm:$0xff]
    %v165 = vld [vmem:[#allocation2 + $0x88] sm:$0xff]
    %v166 = vld [vmem:[#allocation2 + $0x90] sm:$0xff]
    %v167 = vld [vmem:[#allocation2 + $0x98] sm:$0xff]
    %v168 = vld [vmem:[#allocation2 + $0xa0] sm:$0xff]
    %v169 = vld [vmem:[#allocation2 + $0xa8] sm:$0xff]
    %v170 = vld [vmem:[#allocation2 + $0xb0] sm:$0xff]
    %v171 = vld [vmem:[#allocation2 + $0xb8] sm:$0xff]
    %v172 = vld [vmem:[#allocation2 + $0xc0] sm:$0xff]
    %v173 = vld [vmem:[#allocation2 + $0xc8] sm:$0xff]
    %v174 = vld [vmem:[#allocation2 + $0xd0] sm:$0xff]
    %v175 = vld [vmem:[#allocation2 + $0xd8] sm:$0xff]
    %v176 = vld [vmem:[#allocation2 + $0xe0] sm:$0xff]
    %v177 = vld [vmem:[#allocation2 + $0xe8] sm:$0xff]
    %v178 = vld [vmem:[#allocation2 + $0xf0] sm:$0xff]
    %v179 = vld [vmem:[#allocation2 + $0xf8] sm:$0xff]
    %v212 = vunpack.c.l.b16 %v148
    %v213 = vunpack.c.h.b16 %v148
    %v214 = vunpack.c.l.b16 %v149
    %v215 = vunpack.c.h.b16 %v149
    %v216 = vunpack.c.l.b16 %v150
    %v217 = vunpack.c.h.b16 %v150
    %v218 = vunpack.c.l.b16 %v151
    %v219 = vunpack.c.h.b16 %v151
    %v220 = vunpack.c.l.b16 %v152
    %v221 = vunpack.c.h.b16 %v152
    %v222 = vunpack.c.l.b16 %v153
    %v223 = vunpack.c.h.b16 %v153
    %v224 = vunpack.c.l.b16 %v154
    %v225 = vunpack.c.h.b16 %v154
    %v226 = vunpack.c.l.b16 %v155
    %v227 = vunpack.c.h.b16 %v155
    %v228 = vunpack.c.l.b16 %v156
    %v229 = vunpack.c.h.b16 %v156
    %v230 = vunpack.c.l.b16 %v157
    %v231 = vunpack.c.h.b16 %v157
    %v232 = vunpack.c.l.b16 %v158
    %v233 = vunpack.c.h.b16 %v158
    %v234 = vunpack.c.l.b16 %v159
    %v235 = vunpack.c.h.b16 %v159
    %v236 = vunpack.c.l.b16 %v160
    %v237 = vunpack.c.h.b16 %v160
    %v238 = vunpack.c.l.b16 %v161
    %v239 = vunpack.c.h.b16 %v161
    %v240 = vunpack.c.l.b16 %v162
    %v241 = vunpack.c.h.b16 %v162
    %v242 = vunpack.c.l.b16 %v163
    %v243 = vunpack.c.h.b16 %v163
    %v244 = vunpack.c.l.b16 %v164
    %v245 = vunpack.c.h.b16 %v164
    %v246 = vunpack.c.l.b16 %v165
    %v247 = vunpack.c.h.b16 %v165
    %v248 = vunpack.c.l.b16 %v166
    %v249 = vunpack.c.h.b16 %v166
    %v250 = vunpack.c.l.b16 %v167
    %v251 = vunpack.c.h.b16 %v167
    %v252 = vunpack.c.l.b16 %v168
    %v253 = vunpack.c.h.b16 %v168
    %v254 = vunpack.c.l.b16 %v169
    %v255 = vunpack.c.h.b16 %v169
    %v256 = vunpack.c.l.b16 %v170
    %v257 = vunpack.c.h.b16 %v170
    %v258 = vunpack.c.l.b16 %v171
    %v259 = vunpack.c.h.b16 %v171
    %v260 = vunpack.c.l.b16 %v172
    %v261 = vunpack.c.h.b16 %v172
    %v262 = vunpack.c.l.b16 %v173
    %v263 = vunpack.c.h.b16 %v173
    %v264 = vunpack.c.l.b16 %v174
    %v265 = vunpack.c.h.b16 %v174
    %v266 = vunpack.c.l.b16 %v175
    %v267 = vunpack.c.h.b16 %v175
    %v268 = vunpack.c.l.b16 %v176
    %v269 = vunpack.c.h.b16 %v176
    %v270 = vunpack.c.l.b16 %v177
    %v271 = vunpack.c.h.b16 %v177
    %v272 = vunpack.c.l.b16 %v178
    %v273 = vunpack.c.h.b16 %v178
    %v274 = vunpack.c.l.b16 %v179
    %v275 = vunpack.c.h.b16 %v179
    %v276 = vpack.c.b16 %v214, %v212
    %v277 = vpack.c.b16 %v215, %v213
    %v278 = vpack.c.b16 %v218, %v216
    %v279 = vpack.c.b16 %v219, %v217
    %v280 = vpack.c.b16 %v222, %v220
    %v281 = vpack.c.b16 %v223, %v221
    %v282 = vpack.c.b16 %v226, %v224
    %v283 = vpack.c.b16 %v227, %v225
    %v284 = vpack.c.b16 %v230, %v228
    %v285 = vpack.c.b16 %v231, %v229
    %v286 = vpack.c.b16 %v234, %v232
    %v287 = vpack.c.b16 %v235, %v233
    %v288 = vpack.c.b16 %v238, %v236
    %v289 = vpack.c.b16 %v239, %v237
    %v290 = vpack.c.b16 %v242, %v240
    %v291 = vpack.c.b16 %v243, %v241
    %v292 = vpack.c.b16 %v246, %v244
    %v293 = vpack.c.b16 %v247, %v245
    %v294 = vpack.c.b16 %v250, %v248
    %v295 = vpack.c.b16 %v251, %v249
    %v296 = vpack.c.b16 %v254, %v252
    %v297 = vpack.c.b16 %v255, %v253
    %v298 = vpack.c.b16 %v258, %v256
    %v299 = vpack.c.b16 %v259, %v257
    %v300 = vpack.c.b16 %v262, %v260
    %v301 = vpack.c.b16 %v263, %v261
    %v302 = vpack.c.b16 %v266, %v264
    %v303 = vpack.c.b16 %v267, %v265
    %v304 = vpack.c.b16 %v270, %v268
    %v305 = vpack.c.b16 %v271, %v269
    %v306 = vpack.c.b16 %v274, %v272
    %v307 = vpack.c.b16 %v275, %v273
    %340 = vmatprep.subr.bf16.mxu0 %v277
    %341 = vmatpush1.bf16.msra.mxu0 %v276
    %342 = vmatprep.subr.bf16.mxu0 %v279
    %343 = vmatpush1.bf16.msra.mxu0 %v278
    %344 = vmatprep.subr.bf16.mxu0 %v281
    %345 = vmatpush1.bf16.msra.mxu0 %v280
    %346 = vmatprep.subr.bf16.mxu0 %v283
    %347 = vmatpush1.bf16.msra.mxu0 %v282
    %348 = vmatprep.subr.bf16.mxu0 %v285
    %349 = vmatpush1.bf16.msra.mxu0 %v284
    %350 = vmatprep.subr.bf16.mxu0 %v287
    %351 = vmatpush1.bf16.msra.mxu0 %v286
    %352 = vmatprep.subr.bf16.mxu0 %v289
    %353 = vmatpush1.bf16.msra.mxu0 %v288
    %354 = vmatprep.subr.bf16.mxu0 %v291
    %355 = vmatpush1.bf16.msra.mxu0 %v290
    %356 = vmatprep.subr.bf16.mxu0 %v293
    %357 = vmatpush1.bf16.msra.mxu0 %v292
    %358 = vmatprep.subr.bf16.mxu0 %v295
    %359 = vmatpush1.bf16.msra.mxu0 %v294
    %360 = vmatprep.subr.bf16.mxu0 %v297
    %361 = vmatpush1.bf16.msra.mxu0 %v296
    %362 = vmatprep.subr.bf16.mxu0 %v299
    %363 = vmatpush1.bf16.msra.mxu0 %v298
    %364 = vmatprep.subr.bf16.mxu0 %v301
    %365 = vmatpush1.bf16.msra.mxu0 %v300
    %366 = vmatprep.subr.bf16.mxu0 %v303
    %367 = vmatpush1.bf16.msra.mxu0 %v302
    %368 = vmatprep.subr.bf16.mxu0 %v305
    %369 = vmatpush1.bf16.msra.mxu0 %v304
    %370 = vmatprep.subr.bf16.mxu0 %v307
    %371 = vmatpush1.bf16.msra.mxu0 %v306
    %372 = vmatprep.mubr.bf16.mxu0 %v147
    %373 = vmatmul.mubr.bf16.gmra.mrb[0].mxu0 %v146
    %v374 = vpop.f32.mrb[0].mxu0
    %v375 = vadd.f32 0.0, %v374
    %v376 = vpop.f32.mrb[0].mxu0
    %v377 = vadd.f32 0.0, %v376
    %v378 = vpop.f32.mrb[0].mxu0
    %v379 = vadd.f32 0.0, %v378
    %v380 = vpop.f32.mrb[0].mxu0
    %v381 = vadd.f32 0.0, %v380
    %382 = vdwg.mxu0
    %v383 = vpack.c.bf16 %v379, %v375
    %v384 = vpack.c.bf16 %v381, %v377
    %v385 = vld [vmem:[%s4] sm:$0x3]
    %v388 = vunpack.c.l.s4 1966171168
    %v389 = vunpack.c.0.s8 %v388
    %v390 = vlaneseq
    %v391 = vshrl.u32 %v390, 7
    %v392 = vsub.s32 %v389, %v391
    %v393 = vrot.slane %v385, %v392
    %v394 = vcombine.high %v393, %v393
    %v396 = vunpack.c.l.s4 1966171168
    %v397 = vunpack.c.0.s8 %v396
    %v398 = vlaneseq
    %v399 = vshrl.u32 %v398, 7
    %v400 = vsub.s32 %v397, %v399
    %v401 = vrot.slane %v393, %v400
    %v403 = vunpack.c.l.s4 1966171168
    %v404 = vunpack.c.0.s8 %v403
    %v405 = vlaneseq
    %v406 = vshrl.u32 %v405, 7
    %v407 = vsub.s32 %v404, %v406
    %v408 = vrot.slane %v394, %v407
    %v410 = vpack.i.b16 %v401, %v401
    %v412 = vlaneseq
    %v413 = vshrl.u32 %v412, 7
    %v414 = vsub.s32 0, %v413
    %v415 = vrot.slane %v410, %v414
    %v417 = vpack.i.b16 %v408, %v408
    %v419 = vlaneseq
    %v420 = vshrl.u32 %v419, 7
    %v421 = vsub.s32 0, %v420
    %v422 = vrot.slane %v417, %v421
    %v423 = vadd.bf16 %v383, %v415
    %v424 = vadd.bf16 %v384, %v422
    %v425 = vmax.bf16 %v423, 0
    %v426 = vmax.bf16 %v424, 0
    %v427 = vld [vmem:[%s5] sm:$0xf]
    %v428 = vld [vmem:[%s5 + $0x4] sm:$0xf]
    %v429 = vld [vmem:[%s5 + $0x8] sm:$0xf]
    %v430 = vld [vmem:[%s5 + $0xc] sm:$0xf]
    %v431 = vld [vmem:[%s5 + $0x10] sm:$0xf]
    %v432 = vld [vmem:[%s5 + $0x14] sm:$0xf]
    %v433 = vld [vmem:[%s5 + $0x18] sm:$0xf]
    %v434 = vld [vmem:[%s5 + $0x1c] sm:$0xf]
    %v435 = vld [vmem:[%s5 + $0x20] sm:$0xf]
    %v436 = vld [vmem:[%s5 + $0x24] sm:$0xf]
    %v437 = vld [vmem:[%s5 + $0x28] sm:$0xf]
    %v438 = vld [vmem:[%s5 + $0x2c] sm:$0xf]
    %v439 = vld [vmem:[%s5 + $0x30] sm:$0xf]
    %v440 = vld [vmem:[%s5 + $0x34] sm:$0xf]
    %v441 = vld [vmem:[%s5 + $0x38] sm:$0xf]
    %v442 = vld [vmem:[%s5 + $0x3c] sm:$0xf]
    %v443 = vld [vmem:[%s5 + $0x40] sm:$0xf]
    %v444 = vld [vmem:[%s5 + $0x44] sm:$0xf]
    %v445 = vld [vmem:[%s5 + $0x48] sm:$0xf]
    %v446 = vld [vmem:[%s5 + $0x4c] sm:$0xf]
    %v447 = vld [vmem:[%s5 + $0x50] sm:$0xf]
    %v448 = vld [vmem:[%s5 + $0x54] sm:$0xf]
    %v449 = vld [vmem:[%s5 + $0x58] sm:$0xf]
    %v450 = vld [vmem:[%s5 + $0x5c] sm:$0xf]
    %v451 = vld [vmem:[%s5 + $0x60] sm:$0xf]
    %v452 = vld [vmem:[%s5 + $0x64] sm:$0xf]
    %v453 = vld [vmem:[%s5 + $0x68] sm:$0xf]
    %v454 = vld [vmem:[%s5 + $0x6c] sm:$0xf]
    %v455 = vld [vmem:[%s5 + $0x70] sm:$0xf]
    %v456 = vld [vmem:[%s5 + $0x74] sm:$0xf]
    %v457 = vld [vmem:[%s5 + $0x78] sm:$0xf]
    %v458 = vld [vmem:[%s5 + $0x7c] sm:$0xf]
    %v459 = vld [vmem:[%s6] sm:$0x1]
    %v461 = vlaneseq
    %v462 = vshrl.u32 %v461, 7
    %v463 = vsub.s32 0, %v462
    %v464 = vrot.slane %v459, %v463
    %v498 = vunpack.c.l.b16 %v427
    %v499 = vunpack.c.l.b16 %v428
    %v500 = vunpack.c.l.b16 %v429
    %v501 = vunpack.c.l.b16 %v430
    %v502 = vunpack.c.l.b16 %v431
    %v503 = vunpack.c.l.b16 %v432
    %v504 = vunpack.c.l.b16 %v433
    %v505 = vunpack.c.l.b16 %v434
    %v506 = vunpack.c.l.b16 %v435
    %v507 = vunpack.c.l.b16 %v436
    %v508 = vunpack.c.l.b16 %v437
    %v509 = vunpack.c.l.b16 %v438
    %v510 = vunpack.c.l.b16 %v439
    %v511 = vunpack.c.l.b16 %v440
    %v512 = vunpack.c.l.b16 %v441
    %v513 = vunpack.c.l.b16 %v442
    %v514 = vunpack.c.l.b16 %v443
    %v515 = vunpack.c.l.b16 %v444
    %v516 = vunpack.c.l.b16 %v445
    %v517 = vunpack.c.l.b16 %v446
    %v518 = vunpack.c.l.b16 %v447
    %v519 = vunpack.c.l.b16 %v448
    %v520 = vunpack.c.l.b16 %v449
    %v521 = vunpack.c.l.b16 %v450
    %v522 = vunpack.c.l.b16 %v451
    %v523 = vunpack.c.l.b16 %v452
    %v524 = vunpack.c.l.b16 %v453
    %v525 = vunpack.c.l.b16 %v454
    %v526 = vunpack.c.l.b16 %v455
    %v527 = vunpack.c.l.b16 %v456
    %v528 = vunpack.c.l.b16 %v457
    %v529 = vunpack.c.l.b16 %v458
    %v530 = vpack.c.b16 %v499, %v498
    %v531 = vpack.c.b16 %v501, %v500
    %v532 = vpack.c.b16 %v503, %v502
    %v533 = vpack.c.b16 %v505, %v504
    %v534 = vpack.c.b16 %v507, %v506
    %v535 = vpack.c.b16 %v509, %v508
    %v536 = vpack.c.b16 %v511, %v510
    %v537 = vpack.c.b16 %v513, %v512
    %v538 = vpack.c.b16 %v515, %v514
    %v539 = vpack.c.b16 %v517, %v516
    %v540 = vpack.c.b16 %v519, %v518
    %v541 = vpack.c.b16 %v521, %v520
    %v542 = vpack.c.b16 %v523, %v522
    %v543 = vpack.c.b16 %v525, %v524
    %v544 = vpack.c.b16 %v527, %v526
    %v545 = vpack.c.b16 %v529, %v528
    %562 = vmatprep.subr.bf16.mxu0 0
    %563 = vmatpush1.bf16.msra.mxu0 %v530
    %564 = vmatprep.subr.bf16.mxu0 0
    %565 = vmatpush1.bf16.msra.mxu0 %v531
    %566 = vmatprep.subr.bf16.mxu0 0
    %567 = vmatpush1.bf16.msra.mxu0 %v532
    %568 = vmatprep.subr.bf16.mxu0 0
    %569 = vmatpush1.bf16.msra.mxu0 %v533
    %570 = vmatprep.subr.bf16.mxu0 0
    %571 = vmatpush1.bf16.msra.mxu0 %v534
    %572 = vmatprep.subr.bf16.mxu0 0
    %573 = vmatpush1.bf16.msra.mxu0 %v535
    %574 = vmatprep.subr.bf16.mxu0 0
    %575 = vmatpush1.bf16.msra.mxu0 %v536
    %576 = vmatprep.subr.bf16.mxu0 0
    %577 = vmatpush1.bf16.msra.mxu0 %v537
    %578 = vmatprep.subr.bf16.mxu0 0
    %579 = vmatpush1.bf16.msra.mxu0 %v538
    %580 = vmatprep.subr.bf16.mxu0 0
    %581 = vmatpush1.bf16.msra.mxu0 %v539
    %582 = vmatprep.subr.bf16.mxu0 0
    %583 = vmatpush1.bf16.msra.mxu0 %v540
    %584 = vmatprep.subr.bf16.mxu0 0
    %585 = vmatpush1.bf16.msra.mxu0 %v541
    %586 = vmatprep.subr.bf16.mxu0 0
    %587 = vmatpush1.bf16.msra.mxu0 %v542
    %588 = vmatprep.subr.bf16.mxu0 0
    %589 = vmatpush1.bf16.msra.mxu0 %v543
    %590 = vmatprep.subr.bf16.mxu0 0
    %591 = vmatpush1.bf16.msra.mxu0 %v544
    %592 = vmatprep.subr.bf16.mxu0 0
    %593 = vmatpush1.bf16.msra.mxu0 %v545
    %594 = vmatprep.mubr.bf16.mxu0 %v426
    %595 = vmatmul.mubr.bf16.gmra.mrb[0].mxu0 %v425
    %v596 = vpop.f32.mrb[0].mxu0
    %v597 = vadd.f32 %v464, %v596
    %v598 = vpop.f32.mrb[0].mxu0
    %v599 = vpop.f32.mrb[0].mxu0
    %v600 = vadd.f32 %v464, %v599
    %v601 = vpop.f32.mrb[0].mxu0
    %602 = vdwg.mxu0
    %vm603 = vcmask 31744
    %604 = vst.msk [vmem:[%s7] sm:$0xff] %vm603, %v597
    %605 = vst.msk [vmem:[%s7 + $0x8] sm:$0xff] %vm603, %v600
    // Predicated region
    $region34: #{actor_forward.1} parent=1 // pred_check
      _
    $region35: #{actor_forward.1} parent=1 // pred_check_branch
      %607 = sbr.rel (0) target = $region37
    $region36: #{actor_forward.1} parent=1 // pred_region
      _
    $region37: #{actor_forward.1} parent=1 // pred_fallthru
      _
    // Predicated region
    $region38: #{actor_forward.1} parent=1 // pred_check
      _
    $region39: #{actor_forward.1} parent=1 // pred_check_branch
      %609 = sbr.rel (0) target = $region41
    $region40: #{actor_forward.1} parent=1 // pred_region
      _
    $region41: #{actor_forward.1} parent=1 // pred_fallthru
      _
    %610 = vsyncpa [#allocation3], 1

</llo_original>
